<compile_context>
chip_gen: v5e
topology: v5e:2x2
jax: 0.10.0
libtpu: 0.0.40
codegen_flags: <defaults>
</compile_context>

<pallas_src>
import functools

import jax
import jax.numpy as jnp
from jax.experimental import pallas as pl
from jax.experimental.pallas import tpu as pltpu

LANES = 128
SUBLANES = 8
EPS = 1e-8


def _wbce_kernel(p_ref, t_ref, o_ref, acc_ref, *, valid_rows, ragged):
    i = pl.program_id(0)
    last = pl.num_programs(0) - 1
    tile_rows = p_ref.shape[0]

    # Zero the resident vector accumulator on the first reduction step.
    @pl.when(i == 0)
    def _():
        acc_ref[...] = jnp.zeros_like(acc_ref)

    # Stream in native dtype; cast to f32 inside the kernel.
    p = p_ref[...].astype(jnp.float32)
    t = t_ref[...].astype(jnp.float32)

    # Reduced-op form:  term = p^2*b + t*(q^2*a - p^2*b)
    #                        == (1-p)^2 * t * log(p+eps) + p^2 * (1-t) * log(1-p+eps)
    q = 1.0 - p
    a = jnp.log(p + EPS)          # EUP slot
    b = jnp.log(q + EPS)          # EUP slot
    x = (p * p) * b
    term = x + t * ((q * q) * a - x)

    def _accumulate(vals):
        # Sublane fold per tile (VALU vreg-add chain + one tiny XLU fold);
        # the cross-lane reduce is deferred to the final step.
        acc_ref[...] += jnp.sum(vals, axis=0, keepdims=True)

    if ragged:
        # Only the (statically known) ragged last tile pays for the row mask.
        @pl.when(i != last)
        def _():
            _accumulate(term)

        @pl.when(i == last)
        def _():
            row0 = i * tile_rows
            local_row = jax.lax.broadcasted_iota(jnp.int32, term.shape, 0)
            # Keep the select (never rely on multiply-by-zero): the OOB rows of
            # the clipped edge block may hold arbitrary garbage incl. NaN/Inf.
            _accumulate(jnp.where(row0 + local_row < valid_rows, term, 0.0))
    else:
        _accumulate(term)

    # Finalize: single cross-lane reduce + negate, once.
    @pl.when(i == last)
    def _():
        o_ref[...] = jnp.broadcast_to(-jnp.sum(acc_ref[...]), o_ref.shape)


@functools.partial(jax.jit, static_argnames=("tile_rows",))
def weighted_bce_loss(predictions, targets, *, tile_rows=4096):
    assert predictions.shape == targets.shape

    # Flatten (free for contiguous NCHW).  Pad only if numel is not a multiple
    # of one full vreg (8*128); zero padding (p = t = 0) contributes exactly 0.
    p_flat = predictions.reshape(-1)
    t_flat = targets.reshape(-1)
    n = p_flat.shape[0]
    vreg_elems = SUBLANES * LANES
    n_pad = pl.cdiv(n, vreg_elems) * vreg_elems
    if n_pad != n:
        p_flat = jnp.pad(p_flat, (0, n_pad - n))
        t_flat = jnp.pad(t_flat, (0, n_pad - n))

    rows = n_pad // LANES                      # multiple of SUBLANES
    tile_rows = min(tile_rows, rows)           # block may not exceed the array
    assert tile_rows % SUBLANES == 0
    p2d = p_flat.reshape(rows, LANES)
    t2d = t_flat.reshape(rows, LANES)

    num_tiles = pl.cdiv(rows, tile_rows)
    ragged = (rows % tile_rows) != 0           # static: mask code only if needed

    kern = functools.partial(_wbce_kernel, valid_rows=rows, ragged=ragged)

    bytes_in = p2d.size * p2d.dtype.itemsize + t2d.size * t2d.dtype.itemsize
    cost = pl.CostEstimate(
        flops=9 * n_pad,
        transcendentals=2 * n_pad,
        bytes_accessed=bytes_in + SUBLANES * LANES * 4,
    )

    out = pl.pallas_call(
        kern,
        out_shape=jax.ShapeDtypeStruct((SUBLANES, LANES), jnp.float32),
        grid_spec=pltpu.PrefetchScalarGridSpec(
            num_scalar_prefetch=0,
            grid=(num_tiles,),
            in_specs=[
                pl.BlockSpec((tile_rows, LANES), lambda i: (i, 0)),
                pl.BlockSpec((tile_rows, LANES), lambda i: (i, 0)),
            ],
            out_specs=pl.BlockSpec((SUBLANES, LANES), lambda i: (0, 0)),
            scratch_shapes=[pltpu.VMEM((1, LANES), jnp.float32)],
        ),
        compiler_params=pltpu.CompilerParams(
            dimension_semantics=("arbitrary",),
        ),
        cost_estimate=cost,
    )(p2d, t2d)

    return out[0, 0]


def _reference_loss(predictions, targets):
    p = predictions.astype(jnp.float32)
    t = targets.astype(jnp.float32)
    term1 = (1.0 - p) ** 2 * t * jnp.log(p + EPS)
    term2 = p ** 2 * (1.0 - t) * jnp.log(1.0 - p + EPS)
    return -jnp.sum(term1 + term2)


if __name__ == "__main__":
    key = jax.random.PRNGKey(0)
    k_pred, k_tgt = jax.random.split(key)

    # TrackNet-style heatmap predictions/targets, NCHW, values in (0, 1).
    shape = (2, 4, 16, 16)
    predictions = jax.nn.sigmoid(jax.random.normal(k_pred, shape, dtype=jnp.float32))
    targets = (jax.random.uniform(k_tgt, shape, dtype=jnp.float32) > 0.9).astype(jnp.float32)

    loss = weighted_bce_loss(predictions, targets)
    loss = jax.block_until_ready(loss)

    ref = jax.block_until_ready(_reference_loss(predictions, targets))
    assert jnp.allclose(loss, ref, rtol=1e-5, atol=1e-5), (loss, ref)

    print("KERNEL_OK")
</pallas_src>

<mosaic_0001>
module attributes {stable_mosaic.version = 11 : i64} {
  func.func @_wbce_kernel(%arg0: i32, %arg1: memref<16x128xf32, #tpu.memory_space<vmem>>, %arg2: memref<16x128xf32, #tpu.memory_space<vmem>>, %arg3: memref<8x128xf32, #tpu.memory_space<vmem>>, %arg4: memref<1x128xf32, #tpu.memory_space<vmem>>) attributes {dimension_semantics = [#tpu.dimension_semantics<arbitrary>], iteration_bounds = array<i64: 1>, scalar_prefetch = 0 : i64, scratch_operands = 1 : i64, tpu.core_type = #tpu.core_type<tc>, window_params = [{transform_indices = @transform_0, window_bounds = array<i64: 16, 128>}, {transform_indices = @transform_1, window_bounds = array<i64: 16, 128>}, {pipeline_mode = #tpu.pipeline_mode<synchronous>, transform_indices = @transform_2, window_bounds = array<i64: 8, 128>}]} {
    %c0_i32 = arith.constant 0 : i32
    %0 = arith.cmpi eq, %arg0, %c0_i32 : i32
    %1 = arith.extui %0 : i1 to i32
    %c0_i32_0 = arith.constant 0 : i32
    %2 = arith.cmpi ne, %1, %c0_i32_0 : i32
    scf.if %2 {
      %cst_13 = arith.constant 0.000000e+00 : f32
      %28 = vector.broadcast %cst_13 : f32 to vector<1x128xf32>
      %c0_14 = arith.constant 0 : index
      %c0_15 = arith.constant 0 : index
      %29 = vector.load %arg4[%c0_14, %c0_15] : memref<1x128xf32, #tpu.memory_space<vmem>>, vector<1x128xf32>
      tpu.vector_store %arg4[%c0_14, %c0_15], %28 {strides = array<i32>} : memref<1x128xf32, #tpu.memory_space<vmem>>, vector<1x128xf32>,
    } else {
    }
    %c0 = arith.constant 0 : index
    %c0_1 = arith.constant 0 : index
    %3 = vector.load %arg1[%c0, %c0_1] : memref<16x128xf32, #tpu.memory_space<vmem>>, vector<16x128xf32>
    %c0_2 = arith.constant 0 : index
    %c0_3 = arith.constant 0 : index
    %4 = vector.load %arg2[%c0_2, %c0_3] : memref<16x128xf32, #tpu.memory_space<vmem>>, vector<16x128xf32>
    %cst = arith.constant 1.000000e+00 : f32
    %5 = vector.broadcast %cst : f32 to vector<16x128xf32>
    %6 = arith.subf %5, %3 : vector<16x128xf32>
    %cst_4 = arith.constant 9.99999993E-9 : f32
    %7 = vector.broadcast %cst_4 : f32 to vector<16x128xf32>
    %8 = arith.addf %3, %7 : vector<16x128xf32>
    %9 = math.log %8 : vector<16x128xf32>
    %cst_5 = arith.constant 9.99999993E-9 : f32
    %10 = vector.broadcast %cst_5 : f32 to vector<16x128xf32>
    %11 = arith.addf %6, %10 : vector<16x128xf32>
    %12 = math.log %11 : vector<16x128xf32>
    %13 = arith.mulf %3, %3 : vector<16x128xf32>
    %14 = arith.mulf %13, %12 : vector<16x128xf32>
    %15 = arith.mulf %6, %6 : vector<16x128xf32>
    %16 = arith.mulf %15, %9 : vector<16x128xf32>
    %17 = arith.subf %16, %14 : vector<16x128xf32>
    %18 = arith.mulf %4, %17 : vector<16x128xf32>
    %19 = arith.addf %14, %18 : vector<16x128xf32>
    %c0_6 = arith.constant 0 : index
    %c0_7 = arith.constant 0 : index
    %20 = vector.load %arg4[%c0_6, %c0_7] : memref<1x128xf32, #tpu.memory_space<vmem>>, vector<1x128xf32>
    %cst_8 = arith.constant dense<0.000000e+00> : vector<128xf32>
    %21 = vector.multi_reduction <add>, %19, %cst_8 [0] : vector<16x128xf32> to vector<128xf32>
    %22 = vector.shape_cast %21 : vector<128xf32> to vector<1x128xf32>
    %23 = arith.addf %20, %22 : vector<1x128xf32>
    %c0_9 = arith.constant 0 : index
    %c0_10 = arith.constant 0 : index
    %24 = vector.load %arg4[%c0_9, %c0_10] : memref<1x128xf32, #tpu.memory_space<vmem>>, vector<1x128xf32>
    tpu.vector_store %arg4[%c0_9, %c0_10], %23 {strides = array<i32>} : memref<1x128xf32, #tpu.memory_space<vmem>>, vector<1x128xf32>,
    %c0_i32_11 = arith.constant 0 : i32
    %25 = arith.cmpi eq, %arg0, %c0_i32_11 : i32
    %26 = arith.extui %25 : i1 to i32
    %c0_i32_12 = arith.constant 0 : i32
    %27 = arith.cmpi ne, %26, %c0_i32_12 : i32
    scf.if %27 {
      %c0_13 = arith.constant 0 : index
      %c0_14 = arith.constant 0 : index
      %28 = vector.load %arg4[%c0_13, %c0_14] : memref<1x128xf32, #tpu.memory_space<vmem>>, vector<1x128xf32>
      %29 = vector.shape_cast %28 : vector<1x128xf32> to vector<1x1x128xf32>
      %cst_15 = arith.constant dense<0.000000e+00> : vector<1xf32>
      %30 = vector.multi_reduction <add>, %29, %cst_15 [1, 2] : vector<1x1x128xf32> to vector<1xf32>
      %31 = vector.shape_cast %30 : vector<1xf32> to vector<1x1x1xf32>
      %32 = vector.extract %31[0, 0, 0] : f32 from vector<1x1x1xf32>
      %cst_16 = arith.constant 0.000000e+00 : f32
      %33 = arith.subf %cst_16, %32 : f32
      %34 = vector.broadcast %33 : f32 to vector<8x128xf32>
      %c0_17 = arith.constant 0 : index
      %c0_18 = arith.constant 0 : index
      %35 = vector.load %arg3[%c0_17, %c0_18] : memref<8x128xf32, #tpu.memory_space<vmem>>, vector<8x128xf32>
      tpu.vector_store %arg3[%c0_17, %c0_18], %34 {strides = array<i32>} : memref<8x128xf32, #tpu.memory_space<vmem>>, vector<8x128xf32>,
    } else {
    }
    return
  }
  func.func @transform_0(%arg0: i32) -> (i32, i32) {
    %c0_i32 = arith.constant 0 : i32
    %c0_i32_0 = arith.constant 0 : i32
    return %arg0, %c0_i32 : i32, i32
  }
  func.func @transform_1(%arg0: i32) -> (i32, i32) {
    %c0_i32 = arith.constant 0 : i32
    %c0_i32_0 = arith.constant 0 : i32
    return %arg0, %c0_i32 : i32, i32
  }
  func.func @transform_2(%arg0: i32) -> (i32, i32) {
    %c0_i32 = arith.constant 0 : i32
    %c0_i32_0 = arith.constant 0 : i32
    %c0_i32_1 = arith.constant 0 : i32
    return %c0_i32, %c0_i32_0 : i32, i32
  }
}

</mosaic_0001>

<llo_original>
// kernel: weighted_bce_loss.1
$region0: #{weighted_bce_loss.1}
  #allocation0 [shape = 'u32[]', space=smem, size = 0x4, offset = 0x4, fixed_abs, tag = 'smem constant byte address 0x4 - core index']
  #allocation1 [shape = 'u32[72,128]{1,0:T(1,128)}', space=vmem, size = 0x9000, scoped, tag = 'internal scratch']
  #allocation2 [shape = 'f32[1,128]{1,0:T(1,128)}', space=vmem, size = 0x200, scoped, tag = 'scratch operand']
  %s0 = inlined_call_operand.vmem [shape: f32[16,128], index: 0, kind: input, shape index: {}]
  %s1 = inlined_call_operand.vmem [shape: f32[16,128], index: 1, kind: input, shape index: {}]
  %s2 = inlined_call_operand.vmem [shape: f32[8,128], index: 2, kind: output, shape index: {}]
  %s3 = sld [smem:[#allocation0]]
  $region26: #{weighted_bce_loss.1} parent=0
    _
  %s5 = ssub.s32 1, %s3
  %s6 = scalar_select 0, %s5, %s3
  // Predicated region
  $region2: #{weighted_bce_loss.1} parent=0 // pred_check
    _
  $region3: #{weighted_bce_loss.1} parent=0 // pred_check_branch
    %8 = sbr.rel (0) target = $region5
  $region4: #{weighted_bce_loss.1} parent=0 // pred_region
    _
  $region5: #{weighted_bce_loss.1} parent=0 // pred_fallthru
    _
  // Predicated region
  $region6: #{weighted_bce_loss.1} parent=0 // pred_check
    _
  $region7: #{weighted_bce_loss.1} parent=0 // pred_check_branch
    %10 = sbr.rel (0) target = $region9
  $region8: #{weighted_bce_loss.1} parent=0 // pred_region
    _
  $region9: #{weighted_bce_loss.1} parent=0 // pred_fallthru
    _
  %p11 = scmp.eq.s32.totalorder 0, 0
  // Predicated region
  $region10: #{weighted_bce_loss.1} parent=0 // pred_check
    %p12 = pneg %p11
  $region11: #{weighted_bce_loss.1} parent=0 // pred_check_branch
    %14 = sbr.rel (%p12) target = $region13
  $region12: #{weighted_bce_loss.1} parent=0 // pred_region
    %15 = vst [vmem:[#allocation2] sm:$0x1] 0.0
  $region13: #{weighted_bce_loss.1} parent=0 // pred_fallthru
    _
  %v16 = vld [vmem:[%s0] sm:$0xff]
  %v17 = vld [vmem:[%s0 + $0x8] sm:$0xff]
  %v18 = vld [vmem:[%s1] sm:$0xff]
  %v19 = vld [vmem:[%s1 + $0x8] sm:$0xff]
  %v20 = vsub.f32 1.0, %v16
  %v21 = vsub.f32 1.0, %v17
  %v22 = vadd.f32 %v16, 1e-08
  %v23 = vadd.f32 %v17, 1e-08
  %v24 = vlog2.pop %v22
  %v25 = vmul.f32 %v24, 0.6931472
  %v26 = vlog2.pop %v23
  %v27 = vmul.f32 %v26, 0.6931472
  %v28 = vadd.f32 %v20, 1e-08
  %v29 = vadd.f32 %v21, 1e-08
  %v30 = vlog2.pop %v28
  %v31 = vmul.f32 %v30, 0.6931472
  %v32 = vlog2.pop %v29
  %v33 = vmul.f32 %v32, 0.6931472
  %v34 = vmul.f32 %v16, %v16
  %v35 = vmul.f32 %v17, %v17
  %v36 = vmul.f32 %v34, %v31
  %v37 = vmul.f32 %v35, %v33
  %v38 = vmul.f32 %v20, %v20
  %v39 = vmul.f32 %v21, %v21
  %v40 = vmul.f32 %v38, %v25
  %v41 = vmul.f32 %v39, %v27
  %v42 = vsub.f32 %v40, %v36
  %v43 = vsub.f32 %v41, %v37
  %v44 = vmul.f32 %v18, %v42
  %v45 = vmul.f32 %v19, %v43
  %v46 = vadd.f32 %v36, %v44
  %v47 = vadd.f32 %v37, %v45
  %v48 = vld [vmem:[#allocation2] sm:$0x1]
  %v49 = vadd.f32 %v46, %v47
  %v50 = vrot.slane %v49, 4
  %v51 = vadd.f32 %v49, %v50
  %v52 = vrot.slane %v51, 2
  %v53 = vadd.f32 %v51, %v52
  %v54 = vrot.slane %v53, 1
  %v55 = vadd.f32 %v53, %v54
  %v56 = vadd.f32 %v48, %v55
  %57 = vst [vmem:[#allocation2] sm:$0x1] %v56
  // Predicated region
  $region14: #{weighted_bce_loss.1} parent=0 // pred_check
    %p58 = pneg %p11
  $region15: #{weighted_bce_loss.1} parent=0 // pred_check_branch
    %60 = sbr.rel (%p58) target = $region17
  $region16: #{weighted_bce_loss.1} parent=0 // pred_region
    %v61 = vld [vmem:[#allocation2] sm:$0x1]
    %vm62 = vcmask 1040384
    %v63 = vsel %vm62, %v61, 0.0
    %64 = vadd.xlane.f32.xlu0 %v63
    %v65 = vpop.xlane.xlu0 %64
    %v66 = vrot.slane %v65, 4
    %v67 = vadd.f32 %v65, %v66
    %v68 = vrot.slane %v67, 2
    %v69 = vadd.f32 %v67, %v68
    %v70 = vrot.slane %v69, 1
    %v71 = vadd.f32 %v69, %v70
    %s72 = vtos %v71
    %s73 = ssub.f32 0.0, %s72
    %v74 = vstv %s73
    %75 = vst [vmem:[%s2] sm:$0xff] %v74
  $region17: #{weighted_bce_loss.1} parent=0 // pred_fallthru
    _
  // Predicated region
  $region18: #{weighted_bce_loss.1} parent=0 // pred_check
    _
  $region19: #{weighted_bce_loss.1} parent=0 // pred_check_branch
    %77 = sbr.rel (0) target = $region21
  $region20: #{weighted_bce_loss.1} parent=0 // pred_region
    _
  $region21: #{weighted_bce_loss.1} parent=0 // pred_fallthru
    _
  // Predicated region
  $region22: #{weighted_bce_loss.1} parent=0 // pred_check
    _
  $region23: #{weighted_bce_loss.1} parent=0 // pred_check_branch
    %79 = sbr.rel (0) target = $region25
  $region24: #{weighted_bce_loss.1} parent=0 // pred_region
    _
  $region25: #{weighted_bce_loss.1} parent=0 // pred_fallthru
    _

</llo_original>
